<compile_context>
chip_gen: v6e
topology: v6e:2x2x1
jax: 0.10.0
libtpu: 0.0.40
codegen_flags: <defaults>
</compile_context>

<pallas_src>
import math
import functools

import jax
import jax.numpy as jnp
from jax.experimental import pallas as pl
from jax.experimental.pallas import tpu as pltpu


# ----------------------------- Pallas kernel ------------------------------- #
def _build_kernel(TM, HW, TE, inv_size):
    half = TE // 2
    neg_log1e4_over_half = -math.log(10000.0) / float(half)

    def kernel(w_ref,      # SMEM (1,1)   f32   scalar loss weight
               x0_ref,     # VMEM (TM,HW) f32   row block of flattened x_0
               noise_ref,  # VMEM (TM,HW) f32   row block of noise
               sa_ref,     # VMEM (TM,1)  f32   sqrt(alphas_cumprod[t]) per row
               sb_ref,     # VMEM (TM,1)  f32   sqrt(1-alphas_cumprod[t]) per row
               tf_ref,     # VMEM (TM,1)  f32   t per row (float)
               w1_ref,     # VMEM (HW,HW) bf16  layer-1 weight (resident)
               wt_ref,     # VMEM (TE,HW) bf16  time-embedding weight (resident)
               b1_ref,     # VMEM (1,HW)  f32
               w2_ref,     # VMEM (HW,HW) bf16  layer-2 weight (resident)
               b2_ref,     # VMEM (1,HW)  f32
               loss_ref):  # SMEM (1,1)   f32   output: scalar loss (accumulated)
        i = pl.program_id(0)

        @pl.when(i == 0)
        def _():
            loss_ref[0, 0] = 0.0

        noise = noise_ref[...]

        # ---- q_sample / predict_xt (f32 VPU path) ----
        x_t = sa_ref[...] * x0_ref[...] + sb_ref[...] * noise

        # ---- sinusoidal time embedding (TM, TE), built in-kernel, no padding ----
        j = jax.lax.broadcasted_iota(jnp.int32, (TM, TE), 1)
        jh = (j % half).astype(jnp.float32)
        freq = jnp.exp(neg_log1e4_over_half * jh)
        ang = tf_ref[...] * freq
        temb = jnp.where(j < half, jnp.sin(ang), jnp.cos(ang))

        # ---- model(x_t, t): two dots accumulated in f32 + ReLU + layer-2 dot ----
        h = jnp.dot(x_t.astype(jnp.bfloat16), w1_ref[...],
                    preferred_element_type=jnp.float32)
        h = h + jnp.dot(temb.astype(jnp.bfloat16), wt_ref[...],
                        preferred_element_type=jnp.float32)
        h = jnp.maximum(h + b1_ref[...], 0.0)
        pred = jnp.dot(h.astype(jnp.bfloat16), w2_ref[...],
                       preferred_element_type=jnp.float32) + b2_ref[...]

        # ---- weighted-MSE: per-block partial sum into the resident scalar ----
        diff = pred - noise
        loss_ref[0, 0] += jnp.sum(diff * diff)

        @pl.when(i == pl.num_programs(0) - 1)
        def _():
            loss_ref[0, 0] = loss_ref[0, 0] * (w_ref[0, 0] * inv_size)

    return kernel


# ------------------------------ JAX wrapper -------------------------------- #
def make_ddpm_trainer(T, betas, params):
    """Returns a callable (x_0, key, weights) -> scalar loss."""
    alphas = 1.0 - betas
    alphas_cumprod = jnp.cumprod(alphas)
    sa_tab = jnp.sqrt(alphas_cumprod).astype(jnp.float32)        # (T,)
    sb_tab = jnp.sqrt(1.0 - alphas_cumprod).astype(jnp.float32)  # (T,)

    w1, wt, b1, w2, b2 = params
    HW = w1.shape[0]
    TE = wt.shape[0]

    # bf16 matmul weights (f32 accumulation in-kernel), f32 biases.
    w1_bf = w1.astype(jnp.bfloat16)
    wt_bf = wt.astype(jnp.bfloat16)
    w2_bf = w2.astype(jnp.bfloat16)
    b1_f = b1.astype(jnp.float32).reshape(1, HW)
    b2_f = b2.astype(jnp.float32).reshape(1, HW)

    @jax.jit
    def _forward(x_0, key, weights):
        B, C, H, W = x_0.shape
        assert H * W == HW, "spatial size must match model width"
        BC = B * C

        # Row-block tile for the grid (multiple of 8, amortizes resident weights).
        TM = BC if BC <= 256 else 256
        assert BC % TM == 0 and TM % 8 == 0
        gm = BC // TM

        k_t, k_n = jax.random.split(key)
        # SamplingType.STOCHASTIC: t ~ randint(0, T, (B,))
        t = jax.random.randint(k_t, (B,), 0, T, dtype=jnp.int32)
        # noise ~ randn_like(x_0)   (host-side; see TODO about pltpu.stateful_normal)
        noise = jax.random.normal(k_n, (BC, HW), dtype=jnp.float32)

        # Tiny per-row coefficient gathers (replaces the in-kernel select loop).
        sa_rows = jnp.repeat(sa_tab[t], C).reshape(BC, 1)
        sb_rows = jnp.repeat(sb_tab[t], C).reshape(BC, 1)
        tf_rows = jnp.repeat(t.astype(jnp.float32), C).reshape(BC, 1)

        x0_flat = x_0.reshape(BC, HW).astype(jnp.float32)
        w_scalar = jnp.asarray(weights, jnp.float32).reshape(1, 1)

        kernel = _build_kernel(TM, HW, TE, 1.0 / float(BC * HW))

        smem = pltpu.MemorySpace.SMEM
        flops = 4 * BC * HW * HW + 2 * BC * TE * HW + 8 * BC * HW
        bytes_accessed = (4 * (2 * BC * HW + 3 * BC + 2 * HW + 2)
                          + 2 * (2 * HW * HW + TE * HW))

        loss = pl.pallas_call(
            kernel,
            out_shape=jax.ShapeDtypeStruct((1, 1), jnp.float32),
            grid=(gm,),
            in_specs=[
                pl.BlockSpec(memory_space=smem),            # loss weight scalar
                pl.BlockSpec((TM, HW), lambda i: (i, 0)),   # x0 row block
                pl.BlockSpec((TM, HW), lambda i: (i, 0)),   # noise row block
                pl.BlockSpec((TM, 1), lambda i: (i, 0)),    # sqrt(acp[t]) per row
                pl.BlockSpec((TM, 1), lambda i: (i, 0)),    # sqrt(1-acp[t]) per row
                pl.BlockSpec((TM, 1), lambda i: (i, 0)),    # t per row
                pl.BlockSpec((HW, HW), lambda i: (0, 0)),   # W1 (resident)
                pl.BlockSpec((TE, HW), lambda i: (0, 0)),   # Wt (resident)
                pl.BlockSpec((1, HW), lambda i: (0, 0)),    # b1 (resident)
                pl.BlockSpec((HW, HW), lambda i: (0, 0)),   # W2 (resident)
                pl.BlockSpec((1, HW), lambda i: (0, 0)),    # b2 (resident)
            ],
            out_specs=pl.BlockSpec(memory_space=smem),      # scalar accumulator
            compiler_params=pltpu.CompilerParams(
                dimension_semantics=("arbitrary",)),        # loss accumulates over rows
            cost_estimate=pl.CostEstimate(
                flops=flops, transcendentals=3 * BC * TE,
                bytes_accessed=bytes_accessed),
        )(w_scalar, x0_flat, noise, sa_rows, sb_rows, tf_rows,
          w1_bf, wt_bf, b1_f, w2_bf, b2_f)
        return loss[0, 0]

    def forward(x_0, key, weights=1.0):
        return _forward(x_0, key, weights)

    return forward


# --------------------------------- main ------------------------------------ #
if __name__ == "__main__":
    # Small shapes consistent with the module's forward.
    B, C, H, W = 2, 4, 16, 16
    HW = H * W
    TE = 32          # time embedding dim
    T = 100          # number of diffusion steps

    # betas in (0, 1), 1-D (linear schedule)
    betas = jnp.linspace(1e-4, 0.02, T, dtype=jnp.float32)

    # Deterministic synthetic parameters and inputs from PRNGKey(0).
    key0 = jax.random.PRNGKey(0)
    k1, k2, k3, k_x, k_fwd = jax.random.split(key0, 5)
    w1 = jax.random.normal(k1, (HW, HW), dtype=jnp.float32) * 0.02
    wt = jax.random.normal(k2, (TE, HW), dtype=jnp.float32) * 0.02
    b1 = jnp.zeros((1, HW), dtype=jnp.float32)
    w2 = jax.random.normal(k3, (HW, HW), dtype=jnp.float32) * 0.02
    b2 = jnp.zeros((1, HW), dtype=jnp.float32)

    trainer = make_ddpm_trainer(T, betas, (w1, wt, b1, w2, b2))

    x_0 = jax.random.normal(k_x, (B, C, H, W), dtype=jnp.float32)

    loss = trainer(x_0, k_fwd, weights=1.0)
    jax.block_until_ready(loss)

    print("KERNEL_OK")
</pallas_src>

<mosaic_0001>
module attributes {stable_mosaic.version = 11 : i64} {
  func.func @kernel(%arg0: i32, %arg1: memref<1x1xf32, #tpu.memory_space<smem>>, %arg2: memref<8x256xf32, #tpu.memory_space<vmem>>, %arg3: memref<8x256xf32, #tpu.memory_space<vmem>>, %arg4: memref<8x1xf32, #tpu.memory_space<vmem>>, %arg5: memref<8x1xf32, #tpu.memory_space<vmem>>, %arg6: memref<8x1xf32, #tpu.memory_space<vmem>>, %arg7: memref<256x256xbf16, #tpu.memory_space<vmem>>, %arg8: memref<32x256xbf16, #tpu.memory_space<vmem>>, %arg9: memref<1x256xf32, #tpu.memory_space<vmem>>, %arg10: memref<256x256xbf16, #tpu.memory_space<vmem>>, %arg11: memref<1x256xf32, #tpu.memory_space<vmem>>, %arg12: memref<1x1xf32, #tpu.memory_space<smem>>) attributes {dimension_semantics = [#tpu.dimension_semantics<arbitrary>], iteration_bounds = array<i64: 1>, scalar_prefetch = 0 : i64, scratch_operands = 0 : i64, tpu.core_type = #tpu.core_type<tc>, window_params = [{transform_indices = @transform_0, window_bounds = array<i64: 1, 1>}, {transform_indices = @transform_1, window_bounds = array<i64: 8, 256>}, {transform_indices = @transform_2, window_bounds = array<i64: 8, 256>}, {transform_indices = @transform_3, window_bounds = array<i64: 8, 1>}, {transform_indices = @transform_4, window_bounds = array<i64: 8, 1>}, {transform_indices = @transform_5, window_bounds = array<i64: 8, 1>}, {pipeline_mode = #tpu.pipeline_mode<synchronous>, transform_indices = @transform_6, window_bounds = array<i64: 256, 256>}, {pipeline_mode = #tpu.pipeline_mode<synchronous>, transform_indices = @transform_7, window_bounds = array<i64: 32, 256>}, {pipeline_mode = #tpu.pipeline_mode<synchronous>, transform_indices = @transform_8, window_bounds = array<i64: 1, 256>}, {pipeline_mode = #tpu.pipeline_mode<synchronous>, transform_indices = @transform_9, window_bounds = array<i64: 256, 256>}, {pipeline_mode = #tpu.pipeline_mode<synchronous>, transform_indices = @transform_10, window_bounds = array<i64: 1, 256>}, {transform_indices = @transform_11, window_bounds = array<i64: 1, 1>}]} {
    %c0_i32 = arith.constant 0 : i32
    %0 = arith.cmpi eq, %arg0, %c0_i32 : i32
    %1 = arith.extui %0 : i1 to i32
    %c0_i32_0 = arith.constant 0 : i32
    %2 = arith.cmpi ne, %1, %c0_i32_0 : i32
    scf.if %2 {
      %cst_36 = arith.constant 0.000000e+00 : f32
      %c0_37 = arith.constant 0 : index
      %c0_38 = arith.constant 0 : index
      %71 = memref.load %arg12[%c0_37, %c0_38] : memref<1x1xf32, #tpu.memory_space<smem>>
      memref.store %cst_36, %arg12[%c0_37, %c0_38] : memref<1x1xf32, #tpu.memory_space<smem>>
    } else {
    }
    %c0 = arith.constant 0 : index
    %c0_1 = arith.constant 0 : index
    %3 = vector.load %arg3[%c0, %c0_1] : memref<8x256xf32, #tpu.memory_space<vmem>>, vector<8x256xf32>
    %c0_2 = arith.constant 0 : index
    %c0_3 = arith.constant 0 : index
    %4 = vector.load %arg4[%c0_2, %c0_3] : memref<8x1xf32, #tpu.memory_space<vmem>>, vector<8x1xf32>
    %c0_4 = arith.constant 0 : index
    %c0_5 = arith.constant 0 : index
    %5 = vector.load %arg2[%c0_4, %c0_5] : memref<8x256xf32, #tpu.memory_space<vmem>>, vector<8x256xf32>
    %6 = vector.broadcast %4 : vector<8x1xf32> to vector<8x256xf32>
    %7 = arith.mulf %6, %5 : vector<8x256xf32>
    %c0_6 = arith.constant 0 : index
    %c0_7 = arith.constant 0 : index
    %8 = vector.load %arg5[%c0_6, %c0_7] : memref<8x1xf32, #tpu.memory_space<vmem>>, vector<8x1xf32>
    %9 = vector.broadcast %8 : vector<8x1xf32> to vector<8x256xf32>
    %10 = arith.mulf %9, %3 : vector<8x256xf32>
    %11 = arith.addf %7, %10 : vector<8x256xf32>
    %12 = tpu.iota {dimensions = array<i32: 1>} : vector<8x32xi32>
    %c16_i32 = arith.constant 16 : i32
    %c0_i32_8 = arith.constant 0 : i32
    %13 = arith.cmpi eq, %c16_i32, %c0_i32_8 : i32
    %c1_i32 = arith.constant 1 : i32
    %14 = arith.select %13, %c1_i32, %c16_i32 : i32
    %15 = vector.broadcast %14 : i32 to vector<8x32xi32>
    %16 = arith.remsi %12, %15 : vector<8x32xi32>
    %c0_i32_9 = arith.constant 0 : i32
    %17 = vector.broadcast %c0_i32_9 : i32 to vector<8x32xi32>
    %18 = arith.cmpi ne, %16, %17 : vector<8x32xi32>
    %c0_i32_10 = arith.constant 0 : i32
    %19 = vector.broadcast %c0_i32_10 : i32 to vector<8x32xi32>
    %20 = arith.cmpi slt, %16, %19 : vector<8x32xi32>
    %c0_i32_11 = arith.constant 0 : i32
    %21 = arith.cmpi slt, %14, %c0_i32_11 : i32
    %22 = vector.broadcast %21 : i1 to vector<8x32xi1>
    %23 = vector.broadcast %22 : vector<8x32xi1> to vector<8x32xi1>
    %24 = arith.xori %20, %23 : vector<8x32xi1>
    %25 = arith.andi %24, %18 : vector<8x32xi1>
    %26 = vector.broadcast %14 : i32 to vector<8x32xi32>
    %27 = arith.addi %16, %26 : vector<8x32xi32>
    %28 = arith.select %25, %27, %16 : vector<8x32xi1>, vector<8x32xi32>
    %29 = arith.sitofp %28 : vector<8x32xi32> to vector<8x32xf32>
    %cst = arith.constant -0.575646281 : f32
    %30 = vector.broadcast %cst : f32 to vector<8x32xf32>
    %31 = arith.mulf %30, %29 : vector<8x32xf32>
    %32 = math.exp %31 : vector<8x32xf32>
    %c0_12 = arith.constant 0 : index
    %c0_13 = arith.constant 0 : index
    %33 = vector.load %arg6[%c0_12, %c0_13] : memref<8x1xf32, #tpu.memory_space<vmem>>, vector<8x1xf32>
    %34 = vector.broadcast %33 : vector<8x1xf32> to vector<8x32xf32>
    %35 = arith.mulf %34, %32 : vector<8x32xf32>
    %c16_i32_14 = arith.constant 16 : i32
    %36 = vector.broadcast %c16_i32_14 : i32 to vector<8x32xi32>
    %37 = arith.cmpi slt, %12, %36 : vector<8x32xi32>
    %38 = math.sin %35 : vector<8x32xf32>
    %39 = math.cos %35 : vector<8x32xf32>
    %40 = arith.select %37, %38, %39 : vector<8x32xi1>, vector<8x32xf32>
    %41 = arith.truncf %11 : vector<8x256xf32> to vector<8x256xbf16>
    %c0_15 = arith.constant 0 : index
    %c0_16 = arith.constant 0 : index
    %42 = vector.load %arg7[%c0_15, %c0_16] : memref<256x256xbf16, #tpu.memory_space<vmem>>, vector<256x256xbf16>
    %cst_17 = arith.constant dense<0.000000e+00> : vector<8x256xf32>
    %43 = tpu.matmul %41, %42, %cst_17 {dimension_numbers = #tpu.dot_dimension_numbers<[1], [0], [0], [1], [0, 0, 1, 1], [], []>} : vector<8x256xbf16>, vector<256x256xbf16>, vector<8x256xf32> -> vector<8x256xf32>
    %44 = arith.truncf %40 : vector<8x32xf32> to vector<8x32xbf16>
    %c0_18 = arith.constant 0 : index
    %c0_19 = arith.constant 0 : index
    %45 = vector.load %arg8[%c0_18, %c0_19] : memref<32x256xbf16, #tpu.memory_space<vmem>>, vector<32x256xbf16>
    %cst_20 = arith.constant dense<0.000000e+00> : vector<8x256xf32>
    %46 = tpu.matmul %44, %45, %cst_20 {dimension_numbers = #tpu.dot_dimension_numbers<[1], [0], [0], [1], [0, 0, 1, 1], [], []>} : vector<8x32xbf16>, vector<32x256xbf16>, vector<8x256xf32> -> vector<8x256xf32>
    %47 = arith.addf %43, %46 : vector<8x256xf32>
    %c0_21 = arith.constant 0 : index
    %c0_22 = arith.constant 0 : index
    %48 = vector.load %arg9[%c0_21, %c0_22] : memref<1x256xf32, #tpu.memory_space<vmem>>, vector<1x256xf32>
    %49 = vector.broadcast %48 : vector<1x256xf32> to vector<8x256xf32>
    %50 = arith.addf %47, %49 : vector<8x256xf32>
    %cst_23 = arith.constant 0.000000e+00 : f32
    %51 = vector.broadcast %cst_23 : f32 to vector<8x256xf32>
    %52 = arith.maximumf %50, %51 : vector<8x256xf32>
    %53 = arith.truncf %52 : vector<8x256xf32> to vector<8x256xbf16>
    %c0_24 = arith.constant 0 : index
    %c0_25 = arith.constant 0 : index
    %54 = vector.load %arg10[%c0_24, %c0_25] : memref<256x256xbf16, #tpu.memory_space<vmem>>, vector<256x256xbf16>
    %cst_26 = arith.constant dense<0.000000e+00> : vector<8x256xf32>
    %55 = tpu.matmul %53, %54, %cst_26 {dimension_numbers = #tpu.dot_dimension_numbers<[1], [0], [0], [1], [0, 0, 1, 1], [], []>} : vector<8x256xbf16>, vector<256x256xbf16>, vector<8x256xf32> -> vector<8x256xf32>
    %c0_27 = arith.constant 0 : index
    %c0_28 = arith.constant 0 : index
    %56 = vector.load %arg11[%c0_27, %c0_28] : memref<1x256xf32, #tpu.memory_space<vmem>>, vector<1x256xf32>
    %57 = vector.broadcast %56 : vector<1x256xf32> to vector<8x256xf32>
    %58 = arith.addf %55, %57 : vector<8x256xf32>
    %59 = arith.subf %58, %3 : vector<8x256xf32>
    %c0_29 = arith.constant 0 : index
    %c0_30 = arith.constant 0 : index
    %60 = memref.load %arg12[%c0_29, %c0_30] : memref<1x1xf32, #tpu.memory_space<smem>>
    %61 = arith.mulf %59, %59 : vector<8x256xf32>
    %62 = vector.shape_cast %61 : vector<8x256xf32> to vector<1x8x256xf32>
    %cst_31 = arith.constant dense<0.000000e+00> : vector<1xf32>
    %63 = vector.multi_reduction <add>, %62, %cst_31 [1, 2] : vector<1x8x256xf32> to vector<1xf32>
    %64 = vector.shape_cast %63 : vector<1xf32> to vector<1x1x1xf32>
    %65 = vector.extract %64[0, 0, 0] : f32 from vector<1x1x1xf32>
    %66 = arith.addf %60, %65 : f32
    %c0_32 = arith.constant 0 : index
    %c0_33 = arith.constant 0 : index
    %67 = memref.load %arg12[%c0_32, %c0_33] : memref<1x1xf32, #tpu.memory_space<smem>>
    memref.store %66, %arg12[%c0_32, %c0_33] : memref<1x1xf32, #tpu.memory_space<smem>>
    %c0_i32_34 = arith.constant 0 : i32
    %68 = arith.cmpi eq, %arg0, %c0_i32_34 : i32
    %69 = arith.extui %68 : i1 to i32
    %c0_i32_35 = arith.constant 0 : i32
    %70 = arith.cmpi ne, %69, %c0_i32_35 : i32
    scf.if %70 {
      %c0_36 = arith.constant 0 : index
      %c0_37 = arith.constant 0 : index
      %71 = memref.load %arg12[%c0_36, %c0_37] : memref<1x1xf32, #tpu.memory_space<smem>>
      %c0_38 = arith.constant 0 : index
      %c0_39 = arith.constant 0 : index
      %72 = memref.load %arg1[%c0_38, %c0_39] : memref<1x1xf32, #tpu.memory_space<smem>>
      %cst_40 = arith.constant 4.8828125E-4 : f32
      %73 = arith.mulf %72, %cst_40 : f32
      %74 = arith.mulf %71, %73 : f32
      %c0_41 = arith.constant 0 : index
      %c0_42 = arith.constant 0 : index
      %75 = memref.load %arg12[%c0_41, %c0_42] : memref<1x1xf32, #tpu.memory_space<smem>>
      memref.store %74, %arg12[%c0_41, %c0_42] : memref<1x1xf32, #tpu.memory_space<smem>>
    } else {
    }
    return
  }
  func.func @transform_0(%arg0: i32) -> (i32, i32) {
    %c0_i32 = arith.constant 0 : i32
    %c0_i32_0 = arith.constant 0 : i32
    %c0_i32_1 = arith.constant 0 : i32
    return %c0_i32, %c0_i32_0 : i32, i32
  }
  func.func @transform_1(%arg0: i32) -> (i32, i32) {
    %c0_i32 = arith.constant 0 : i32
    %c0_i32_0 = arith.constant 0 : i32
    return %arg0, %c0_i32 : i32, i32
  }
  func.func @transform_2(%arg0: i32) -> (i32, i32) {
    %c0_i32 = arith.constant 0 : i32
    %c0_i32_0 = arith.constant 0 : i32
    return %arg0, %c0_i32 : i32, i32
  }
  func.func @transform_3(%arg0: i32) -> (i32, i32) {
    %c0_i32 = arith.constant 0 : i32
    %c0_i32_0 = arith.constant 0 : i32
    return %arg0, %c0_i32 : i32, i32
  }
  func.func @transform_4(%arg0: i32) -> (i32, i32) {
    %c0_i32 = arith.constant 0 : i32
    %c0_i32_0 = arith.constant 0 : i32
    return %arg0, %c0_i32 : i32, i32
  }
  func.func @transform_5(%arg0: i32) -> (i32, i32) {
    %c0_i32 = arith.constant 0 : i32
    %c0_i32_0 = arith.constant 0 : i32
    return %arg0, %c0_i32 : i32, i32
  }
  func.func @transform_6(%arg0: i32) -> (i32, i32) {
    %c0_i32 = arith.constant 0 : i32
    %c0_i32_0 = arith.constant 0 : i32
    %c0_i32_1 = arith.constant 0 : i32
    return %c0_i32, %c0_i32_0 : i32, i32
  }
  func.func @transform_7(%arg0: i32) -> (i32, i32) {
    %c0_i32 = arith.constant 0 : i32
    %c0_i32_0 = arith.constant 0 : i32
    %c0_i32_1 = arith.constant 0 : i32
    return %c0_i32, %c0_i32_0 : i32, i32
  }
  func.func @transform_8(%arg0: i32) -> (i32, i32) {
    %c0_i32 = arith.constant 0 : i32
    %c0_i32_0 = arith.constant 0 : i32
    %c0_i32_1 = arith.constant 0 : i32
    return %c0_i32, %c0_i32_0 : i32, i32
  }
  func.func @transform_9(%arg0: i32) -> (i32, i32) {
    %c0_i32 = arith.constant 0 : i32
    %c0_i32_0 = arith.constant 0 : i32
    %c0_i32_1 = arith.constant 0 : i32
    return %c0_i32, %c0_i32_0 : i32, i32
  }
  func.func @transform_10(%arg0: i32) -> (i32, i32) {
    %c0_i32 = arith.constant 0 : i32
    %c0_i32_0 = arith.constant 0 : i32
    %c0_i32_1 = arith.constant 0 : i32
    return %c0_i32, %c0_i32_0 : i32, i32
  }
  func.func @transform_11(%arg0: i32) -> (i32, i32) {
    %c0_i32 = arith.constant 0 : i32
    %c0_i32_0 = arith.constant 0 : i32
    %c0_i32_1 = arith.constant 0 : i32
    return %c0_i32, %c0_i32_0 : i32, i32
  }
}

</mosaic_0001>

<llo_original>
// kernel: _forward.1
$region0: #{_forward.1}
  #allocation0 [shape = 'u32[]', space=smem, size = 0x4, offset = 0x4, fixed_abs, tag = 'smem constant byte address 0x4 - core index']
  #allocation1 [shape = 'u32[144,128]{1,0:T(1,128)}', space=vmem, size = 0x12000, scoped, tag = 'internal scratch']
  #allocation2 [shape = 'f32[1,1]{1,0:T(1,128)S(6)}', space=smem, size = 0x200, scoped, tag = 'scoped memory for _forward.1']
  %s0 = inlined_call_operand.<no memory space> [shape: f32[1,1], index: 0, kind: input, shape index: {}]
  %s1 = inlined_call_operand.vmem [shape: f32[8,256], index: 1, kind: input, shape index: {}]
  %s2 = inlined_call_operand.vmem [shape: f32[8,256], index: 2, kind: input, shape index: {}]
  %s3 = inlined_call_operand.vmem [shape: f32[8,1], index: 3, kind: input, shape index: {}]
  %s4 = inlined_call_operand.vmem [shape: f32[8,1], index: 4, kind: input, shape index: {}]
  %s5 = inlined_call_operand.vmem [shape: f32[8,1], index: 5, kind: input, shape index: {}]
  %s6 = inlined_call_operand.vmem [shape: bf16[256,256], index: 6, kind: input, shape index: {}]
  %s7 = inlined_call_operand.vmem [shape: bf16[32,256], index: 7, kind: input, shape index: {}]
  %s8 = inlined_call_operand.vmem [shape: f32[1,256], index: 8, kind: input, shape index: {}, may-alias: {8,10}]
  %s9 = inlined_call_operand.vmem [shape: bf16[256,256], index: 9, kind: input, shape index: {}]
  %s10 = inlined_call_operand.vmem [shape: f32[1,256], index: 10, kind: input, shape index: {}, may-alias: {8,10}]
  %s11 = inlined_call_operand.hbm [shape: f32[1,1], index: 11, kind: output, shape index: {}]
  %s12 = sld [smem:[#allocation0]]
  $region62: #{_forward.1} parent=0
    _
  %s14 = ssub.s32 1, %s12
  %s15 = scalar_select 0, %s14, %s12
  %16 = sst [smem:[#allocation2]] %s0
  $region1: #{_forward.1} parent=0
    #allocation3 [shape = 'u8[512]{0}', space=smem, size = 0x200, scoped, tag = 'output window, operand 0, single buffered']
    #allocation4 [shape = 's32[1]{0}', space=sflag, size = 0x4, scoped, tag = 'scoped memory for _forward.1']
    %17 = vsyncpa [#allocation4], 0
    // Predicated region
    $region2: #{_forward.1} parent=1 // pred_check
      _
    $region3: #{_forward.1} parent=1 // pred_check_branch
      %19 = sbr.rel (0) target = $region5
    $region4: #{_forward.1} parent=1 // pred_region
      _
    $region5: #{_forward.1} parent=1 // pred_fallthru
      _
    // Predicated region
    $region6: #{_forward.1} parent=1 // pred_check
      _
    $region7: #{_forward.1} parent=1 // pred_check_branch
      %21 = sbr.rel (0) target = $region9
    $region8: #{_forward.1} parent=1 // pred_region
      _
    $region9: #{_forward.1} parent=1 // pred_fallthru
      _
    // Predicated region
    $region10: #{_forward.1} parent=1 // pred_check
      _
    $region11: #{_forward.1} parent=1 // pred_check_branch
      %23 = sbr.rel (0) target = $region13
    $region12: #{_forward.1} parent=1 // pred_region
      _
    $region13: #{_forward.1} parent=1 // pred_fallthru
      _
    // Predicated region
    $region14: #{_forward.1} parent=1 // pred_check
      _
    $region15: #{_forward.1} parent=1 // pred_check_branch
      %25 = sbr.rel (0) target = $region17
    $region16: #{_forward.1} parent=1 // pred_region
      _
    $region17: #{_forward.1} parent=1 // pred_fallthru
      _
    // Predicated region
    $region18: #{_forward.1} parent=1 // pred_check
      _
    $region19: #{_forward.1} parent=1 // pred_check_branch
      %27 = sbr.rel (0) target = $region21
    $region20: #{_forward.1} parent=1 // pred_region
      _
    $region21: #{_forward.1} parent=1 // pred_fallthru
      _
    // Predicated region
    $region22: #{_forward.1} parent=1 // pred_check
      _
    $region23: #{_forward.1} parent=1 // pred_check_branch
      %29 = sbr.rel (0) target = $region25
    $region24: #{_forward.1} parent=1 // pred_region
      _
    $region25: #{_forward.1} parent=1 // pred_fallthru
      _
    // Predicated region
    $region26: #{_forward.1} parent=1 // pred_check
      _
    $region27: #{_forward.1} parent=1 // pred_check_branch
      %31 = sbr.rel (0) target = $region29
    $region28: #{_forward.1} parent=1 // pred_region
      _
    $region29: #{_forward.1} parent=1 // pred_fallthru
      _
    // Predicated region
    $region30: #{_forward.1} parent=1 // pred_check
      _
    $region31: #{_forward.1} parent=1 // pred_check_branch
      %33 = sbr.rel (0) target = $region33
    $region32: #{_forward.1} parent=1 // pred_region
      _
    $region33: #{_forward.1} parent=1 // pred_fallthru
      _
    // Predicated region
    $region34: #{_forward.1} parent=1 // pred_check
      _
    $region35: #{_forward.1} parent=1 // pred_check_branch
      %35 = sbr.rel (0) target = $region37
    $region36: #{_forward.1} parent=1 // pred_region
      _
    $region37: #{_forward.1} parent=1 // pred_fallthru
      _
    // Predicated region
    $region38: #{_forward.1} parent=1 // pred_check
      _
    $region39: #{_forward.1} parent=1 // pred_check_branch
      %37 = sbr.rel (0) target = $region41
    $region40: #{_forward.1} parent=1 // pred_region
      _
    $region41: #{_forward.1} parent=1 // pred_fallthru
      _
    // Predicated region
    $region42: #{_forward.1} parent=1 // pred_check
      _
    $region43: #{_forward.1} parent=1 // pred_check_branch
      %39 = sbr.rel (0) target = $region45
    $region44: #{_forward.1} parent=1 // pred_region
      _
    $region45: #{_forward.1} parent=1 // pred_fallthru
      _
    %p41 = scmp.eq.s32.totalorder 0, 0
    // Predicated region
    $region46: #{_forward.1} parent=1 // pred_check
      %p42 = pneg %p41
    $region47: #{_forward.1} parent=1 // pred_check_branch
      %44 = sbr.rel (%p42) target = $region49
    $region48: #{_forward.1} parent=1 // pred_region
      %s45 = scalar_lea.smem [#allocation3], 0
      %46 = sst [smem:[%s45]] 0.0
    $region49: #{_forward.1} parent=1 // pred_fallthru
      _
    %v47 = vld [vmem:[%s2] sm:$0xff]
    %v48 = vld [vmem:[%s2 + $0x8] sm:$0xff]
    %v49 = vld [vmem:[%s3] sm:$0xff]
    %v50 = vld [vmem:[%s1] sm:$0xff]
    %v51 = vld [vmem:[%s1 + $0x8] sm:$0xff]
    %53 = vset.pattern.permute.xlu0 0
    %54 = vperm.xlu0 %53, %v49
    %v55 = vpop.permute.xlu0 %54
    %v57 = vmul.f32 %v55, %v50
    %v58 = vmul.f32 %v55, %v51
    %v59 = vld [vmem:[%s4] sm:$0xff]
    %61 = vset.pattern.permute.xlu0 0
    %62 = vperm.xlu0 %61, %v59
    %v63 = vpop.permute.xlu0 %62
    %v65 = vmul.f32 %v63, %v47
    %v66 = vmul.f32 %v63, %v48
    %v67 = vadd.f32 %v57, %v65
    %v68 = vadd.f32 %v58, %v66
    %v69 = vlaneseq
    %v70 = vand.u32 %v69, 127
    %vm71 = vcmp.lt.s32.totalorder %v70, 0
    %v72 = vsub.s32 0, %v70
    %v73 = vsel %vm71, %v72, %v70
    %v74 = vshrl.u32 %v73, 4
    %v75 = vand.u32 %v73, 15
    %v76 = vsub.s32 0, %v75
    %v77 = vsel %vm71, %v76, %v75
    %vm78 = vcmp.ne.s32.totalorder %v77, 0
    %vm79 = vcmp.lt.s32.totalorder %v77, 0
    %vm80 = vmand %vm79, %vm78
    %v81 = vadd.s32 %v77, 16
    %v82 = vsel %vm80, %v81, %v77
    %v83 = vcvt.s32.f32 %v82
    %v84 = vmul.f32 %v83, -0.5756463
    %v85 = vmul.f32 %v84, 1.442695
    %v86 = vpow.pop %v85
    %v87 = vld [vmem:[%s5] sm:$0xff]
    %89 = vset.pattern.permute.xlu0 0
    %90 = vperm.xlu0 %89, %v87
    %v91 = vpop.permute.xlu0 %90
    %v93 = vmul.f32 %v91, %v86
    %vm94 = vcmp.lt.s32.totalorder %v70, 16
    %v95 = vand.u32 2147483647, %v93
    %vm96 = vcmp.le.f32.partialorder %v95, 0.7853982
    %vm97 = vcmp.lt.s32.totalorder %v93, 0
    %v98 = vand.u32 %v93, 2139095040
    %v99 = vshrl.u32 %v98, 23
    %v100 = vsub.s32 %v99, 127
    %v101 = vand.u32 2147483647, %v93
    %v102 = vand.u32 %v101, 8388607
    %v103 = vor.u32 %v102, 8388608
    %v104 = vsub.s32 0, %v103
    %v105 = vadd.s32 %v100, 1
    %vm106 = vcmp.gt.s32.totalorder %v105, 0
    %v107 = vsel %vm106, %v105, 0
    %v108 = vshrl.u32 %v107, 5
    %v109 = vand.u32 %v107, 31
    %v110 = vsub.s32 32, %v109
    %v111 = vshrl.u32 683565275, %v110
    %v112 = vshll.u32 683565275, %v109
    %v113 = vshrl.u32 2475754826, %v110
    %v114 = vor.u32 %v112, %v113
    %v115 = vshll.u32 2475754826, %v109
    %v116 = vshrl.u32 2131351028, %v110
    %v117 = vor.u32 %v115, %v116
    %v118 = vshll.u32 2131351028, %v109
    %v119 = vshrl.u32 2102212464, %v110
    %v120 = vor.u32 %v118, %v119
    %v121 = vshll.u32 2102212464, %v109
    %v122 = vshrl.u32 920167782, %v110
    %v123 = vor.u32 %v121, %v122
    %v124 = vshll.u32 920167782, %v109
    %v125 = vshrl.u32 1326507024, %v110
    %v126 = vor.u32 %v124, %v125
    %vm127 = vcmp.lt.s32.totalorder %v108, 1
    %vm128 = vcmp.lt.s32.totalorder %v108, 2
    %vm129 = vcmp.lt.s32.totalorder %v108, 3
    %vm130 = vcmp.lt.s32.totalorder %v108, 4
    %v131 = vsel %vm127, %v111, %v114
    %v132 = vsel %vm130, %v120, 2102212464
    %v133 = vsel %vm129, %v117, %v132
    %v134 = vsel %vm128, %v131, %v133
    %v135 = vsel %vm127, %v114, %v117
    %v136 = vsel %vm130, %v123, 920167782
    %v137 = vsel %vm129, %v120, %v136
    %v138 = vsel %vm128, %v135, %v137
    %v139 = vsel %vm127, %v117, %v120
    %v140 = vsel %vm130, %v126, 1326507024
    %v141 = vsel %vm129, %v123, %v140
    %v142 = vsel %vm128, %v139, %v141
    %v143 = vshll.u32 %v103, 8
    %v144 = vmul.u32.u64.compose %v143, %v142
    %v145 = vextract.low.u32 %v144
    %v146 = vextract.high.u32 %v144
    %v147 = vmul.u32.u64.compose %v143, %v138
    %v148 = vextract.low.u32 %v147
    %v149 = vextract.high.u32 %v147
    %v150 = vmul.u32 %v143, %v134
    %v151 = vadd.s32 %v146, %v148
    %vm152 = vc.u32 %v146, %v148
    %v153 = vadd.s32 %v149, 1
    %v154 = vsel %vm152, %v153, %v149
    %v155 = vadd.s32 %v150, %v154
    %v156 = vadd.s32 %v155, 536870912
    %v157 = vshrl.u32 %v156, 30
    %v158 = vshll.u32 %v157, 30
    %v159 = vsub.s32 %v155, %v158
    %vm160 = vcmp.lt.s32.totalorder %v159, 0
    %v161 = vsub.s32 0, %v159
    %v162 = vsel %vm160, %v161, %v159
    %v163 = vclz %v162
    %v164 = vsub.s32 %v163, 2
    %vm165 = vcmp.gt.s32.totalorder 0, %v164
    %v166 = vsel %vm165, 0, %v164
    %v167 = vsub.s32 32, %v166
    %v168 = vshll.u32 %v159, %v166
    %v169 = vshrl.u32 %v151, %v167
    %v170 = vor.u32 %v168, %v169
    %v171 = vsub.s32 4294967266, %v166
    %v172 = vadd.s32 %v171, 127
    %v173 = vshll.u32 %v172, 23
    %v174 = vor.u32 4788187, %v173
    %v175 = vand.u32 2147483647, %v174
    %v177 = vcvt.s32.f32 %v170
    %v178 = vmul.f32 %v177, %v175
    %v179 = vxor.u32 %v178, 2147483648
    %v180 = vsel %vm97, %v179, %v178
    %v181 = vsub.s32 4, %v157
    %v182 = vsel %vm97, %v181, %v157
    %v183 = vsel %vm96, %v93, %v180
    %v184 = vsel %vm96, 0, %v182
    %v185 = vcosq.f32.pop %v183
    %v186 = vsinq.f32.pop %v183
    %vm187 = vweird.f32 %v93
    %v188 = vadd.s32 %v184, 3
    %v189 = vand.u32 %v188, 3
    %vm190 = vcmp.lt.s32.totalorder %v189, 2
    %vm191 = vcmp.eq.s32.totalorder %v189, 0
    %v192 = vxor.u32 %v186, 2147483648
    %v193 = vsel %vm191, %v185, %v192
    %vm194 = vcmp.eq.s32.totalorder %v189, 2
    %v195 = vxor.u32 %v185, 2147483648
    %v196 = vsel %vm194, %v195, %v186
    %v197 = vsel %vm190, %v193, %v196
    %v198 = vsel %vm187, nan, %v197
    %v199 = vand.u32 2147483647, %v93
    %vm200 = vcmp.le.f32.partialorder %v199, 0.7853982
    %vm201 = vcmp.lt.s32.totalorder %v93, 0
    %v202 = vand.u32 %v93, 2139095040
    %v203 = vshrl.u32 %v202, 23
    %v204 = vsub.s32 %v203, 127
    %v205 = vand.u32 2147483647, %v93
    %v206 = vand.u32 %v205, 8388607
    %v207 = vor.u32 %v206, 8388608
    %v208 = vsub.s32 0, %v207
    %v209 = vadd.s32 %v204, 1
    %vm210 = vcmp.gt.s32.totalorder %v209, 0
    %v211 = vsel %vm210, %v209, 0
    %v212 = vshrl.u32 %v211, 5
    %v213 = vand.u32 %v211, 31
    %v214 = vsub.s32 32, %v213
    %v215 = vshrl.u32 683565275, %v214
    %v216 = vshll.u32 683565275, %v213
    %v217 = vshrl.u32 2475754826, %v214
    %v218 = vor.u32 %v216, %v217
    %v219 = vshll.u32 2475754826, %v213
    %v220 = vshrl.u32 2131351028, %v214
    %v221 = vor.u32 %v219, %v220
    %v222 = vshll.u32 2131351028, %v213
    %v223 = vshrl.u32 2102212464, %v214
    %v224 = vor.u32 %v222, %v223
    %v225 = vshll.u32 2102212464, %v213
    %v226 = vshrl.u32 920167782, %v214
    %v227 = vor.u32 %v225, %v226
    %v228 = vshll.u32 920167782, %v213
    %v229 = vshrl.u32 1326507024, %v214
    %v230 = vor.u32 %v228, %v229
    %vm231 = vcmp.lt.s32.totalorder %v212, 1
    %vm232 = vcmp.lt.s32.totalorder %v212, 2
    %vm233 = vcmp.lt.s32.totalorder %v212, 3
    %vm234 = vcmp.lt.s32.totalorder %v212, 4
    %v235 = vsel %vm231, %v215, %v218
    %v236 = vsel %vm234, %v224, 2102212464
    %v237 = vsel %vm233, %v221, %v236
    %v238 = vsel %vm232, %v235, %v237
    %v239 = vsel %vm231, %v218, %v221
    %v240 = vsel %vm234, %v227, 920167782
    %v241 = vsel %vm233, %v224, %v240
    %v242 = vsel %vm232, %v239, %v241
    %v243 = vsel %vm231, %v221, %v224
    %v244 = vsel %vm234, %v230, 1326507024
    %v245 = vsel %vm233, %v227, %v244
    %v246 = vsel %vm232, %v243, %v245
    %v247 = vshll.u32 %v207, 8
    %v248 = vmul.u32.u64.compose %v247, %v246
    %v249 = vextract.low.u32 %v248
    %v250 = vextract.high.u32 %v248
    %v251 = vmul.u32.u64.compose %v247, %v242
    %v252 = vextract.low.u32 %v251
    %v253 = vextract.high.u32 %v251
    %v254 = vmul.u32 %v247, %v238
    %v255 = vadd.s32 %v250, %v252
    %vm256 = vc.u32 %v250, %v252
    %v257 = vadd.s32 %v253, 1
    %v258 = vsel %vm256, %v257, %v253
    %v259 = vadd.s32 %v254, %v258
    %v260 = vadd.s32 %v259, 536870912
    %v261 = vshrl.u32 %v260, 30
    %v262 = vshll.u32 %v261, 30
    %v263 = vsub.s32 %v259, %v262
    %vm264 = vcmp.lt.s32.totalorder %v263, 0
    %v265 = vsub.s32 0, %v263
    %v266 = vsel %vm264, %v265, %v263
    %v267 = vclz %v266
    %v268 = vsub.s32 %v267, 2
    %vm269 = vcmp.gt.s32.totalorder 0, %v268
    %v270 = vsel %vm269, 0, %v268
    %v271 = vsub.s32 32, %v270
    %v272 = vshll.u32 %v263, %v270
    %v273 = vshrl.u32 %v255, %v271
    %v274 = vor.u32 %v272, %v273
    %v275 = vsub.s32 4294967266, %v270
    %v276 = vadd.s32 %v275, 127
    %v277 = vshll.u32 %v276, 23
    %v278 = vor.u32 4788187, %v277
    %v279 = vand.u32 2147483647, %v278
    %v281 = vcvt.s32.f32 %v274
    %v282 = vmul.f32 %v281, %v279
    %v283 = vxor.u32 %v282, 2147483648
    %v284 = vsel %vm201, %v283, %v282
    %v285 = vsub.s32 4, %v261
    %v286 = vsel %vm201, %v285, %v261
    %v287 = vsel %vm200, %v93, %v284
    %v288 = vsel %vm200, 0, %v286
    %v289 = vcosq.f32.pop %v287
    %v290 = vsinq.f32.pop %v287
    %vm291 = vweird.f32 %v93
    %v292 = vand.u32 %v288, 3
    %vm293 = vcmp.lt.s32.totalorder %v292, 2
    %vm294 = vcmp.eq.s32.totalorder %v292, 0
    %v295 = vxor.u32 %v290, 2147483648
    %v296 = vsel %vm294, %v289, %v295
    %vm297 = vcmp.eq.s32.totalorder %v292, 2
    %v298 = vxor.u32 %v289, 2147483648
    %v299 = vsel %vm297, %v298, %v290
    %v300 = vsel %vm293, %v296, %v299
    %v301 = vsel %vm291, nan, %v300
    %v302 = vsel %vm94, %v198, %v301
    %v303 = vpack.c.bf16 %v67, %v67
    %v304 = vpack.c.bf16 %v68, %v68
    %v305 = vld [vmem:[%s6] sm:$0xff]
    %v306 = vld [vmem:[%s6 + $0x8] sm:$0xff]
    %v307 = vld [vmem:[%s6 + $0x10] sm:$0xff]
    %v308 = vld [vmem:[%s6 + $0x18] sm:$0xff]
    %v309 = vld [vmem:[%s6 + $0x20] sm:$0xff]
    %v310 = vld [vmem:[%s6 + $0x28] sm:$0xff]
    %v311 = vld [vmem:[%s6 + $0x30] sm:$0xff]
    %v312 = vld [vmem:[%s6 + $0x38] sm:$0xff]
    %v313 = vld [vmem:[%s6 + $0x40] sm:$0xff]
    %v314 = vld [vmem:[%s6 + $0x48] sm:$0xff]
    %v315 = vld [vmem:[%s6 + $0x50] sm:$0xff]
    %v316 = vld [vmem:[%s6 + $0x58] sm:$0xff]
    %v317 = vld [vmem:[%s6 + $0x60] sm:$0xff]
    %v318 = vld [vmem:[%s6 + $0x68] sm:$0xff]
    %v319 = vld [vmem:[%s6 + $0x70] sm:$0xff]
    %v320 = vld [vmem:[%s6 + $0x78] sm:$0xff]
    %v321 = vld [vmem:[%s6 + $0x80] sm:$0xff]
    %v322 = vld [vmem:[%s6 + $0x88] sm:$0xff]
    %v323 = vld [vmem:[%s6 + $0x90] sm:$0xff]
    %v324 = vld [vmem:[%s6 + $0x98] sm:$0xff]
    %v325 = vld [vmem:[%s6 + $0xa0] sm:$0xff]
    %v326 = vld [vmem:[%s6 + $0xa8] sm:$0xff]
    %v327 = vld [vmem:[%s6 + $0xb0] sm:$0xff]
    %v328 = vld [vmem:[%s6 + $0xb8] sm:$0xff]
    %v329 = vld [vmem:[%s6 + $0xc0] sm:$0xff]
    %v330 = vld [vmem:[%s6 + $0xc8] sm:$0xff]
    %v331 = vld [vmem:[%s6 + $0xd0] sm:$0xff]
    %v332 = vld [vmem:[%s6 + $0xd8] sm:$0xff]
    %v333 = vld [vmem:[%s6 + $0xe0] sm:$0xff]
    %v334 = vld [vmem:[%s6 + $0xe8] sm:$0xff]
    %v335 = vld [vmem:[%s6 + $0xf0] sm:$0xff]
    %v336 = vld [vmem:[%s6 + $0xf8] sm:$0xff]
    %v337 = vpack.c.bf16 %v302, %v302
    %v338 = vld [vmem:[%s7] sm:$0xff]
    %v339 = vld [vmem:[%s7 + $0x8] sm:$0xff]
    %v340 = vld [vmem:[%s7 + $0x10] sm:$0xff]
    %v341 = vld [vmem:[%s7 + $0x18] sm:$0xff]
    %v346 = vunpack.c.l.b16 %v338
    %v347 = vunpack.c.h.b16 %v338
    %v348 = vunpack.c.l.b16 %v339
    %v349 = vunpack.c.h.b16 %v339
    %v350 = vunpack.c.l.b16 %v340
    %v351 = vunpack.c.h.b16 %v340
    %v352 = vunpack.c.l.b16 %v341
    %v353 = vunpack.c.h.b16 %v341
    %v354 = vpack.c.b16 %v348, %v346
    %v355 = vpack.c.b16 %v349, %v347
    %v356 = vpack.c.b16 %v352, %v350
    %v357 = vpack.c.b16 %v353, %v351
    %vm362 = vcmask 261120
    %v364 = vsel %vm362, %v337, 0
    %366 = vmatprep.subr.bf16.mxu0 0
    %367 = vmatpush1.bf16.msra.mxu0 0
    %368 = vmatprep.subr.bf16.mxu0 0
    %369 = vmatpush1.bf16.msra.mxu0 0
    %370 = vmatprep.subr.bf16.mxu0 0
    %371 = vmatpush1.bf16.msra.mxu0 0
    %372 = vmatprep.subr.bf16.mxu0 0
    %373 = vmatpush1.bf16.msra.mxu0 0
    %374 = vmatprep.subr.bf16.mxu0 0
    %375 = vmatpush1.bf16.msra.mxu0 0
    %376 = vmatprep.subr.bf16.mxu0 0
    %377 = vmatpush1.bf16.msra.mxu0 0
    %378 = vmatprep.subr.bf16.mxu0 %v357
    %379 = vmatpush1.bf16.msra.mxu0 %v356
    %380 = vmatprep.subr.bf16.mxu0 %v355
    %381 = vmatpush1.bf16.msra.mxu0 %v354
    %382 = vmatprep.subr.bf16.mxu0 0
    %383 = vmatpush2.bf16.msra.mxu0 0
    %384 = vmatprep.subr.bf16.mxu0 0
    %385 = vmatpush2.bf16.msra.mxu0 0
    %386 = vmatprep.subr.bf16.mxu0 0
    %387 = vmatpush2.bf16.msra.mxu0 0
    %388 = vmatprep.subr.bf16.mxu0 0
    %389 = vmatpush2.bf16.msra.mxu0 0
    %390 = vmatprep.subr.bf16.mxu0 0
    %391 = vmatpush2.bf16.msra.mxu0 0
    %392 = vmatprep.subr.bf16.mxu0 0
    %393 = vmatpush2.bf16.msra.mxu0 0
    %394 = vmatprep.subr.bf16.mxu0 0
    %395 = vmatpush2.bf16.msra.mxu0 0
    %396 = vmatprep.subr.bf16.mxu0 0
    %397 = vmatpush2.bf16.msra.mxu0 0
    %398 = vmatprep.mubr.bf16.mxu0 0
    %399 = vmatmul.mubr.bf16.gmra.mxu0 %v364
    %v400 = vpop.f32.mrf.mxu0
    %v401 = vadd.f32 0.0, %v400
    %v402 = vpop.f32.mrf.mxu0
    %v403 = vadd.f32 0.0, %v402
    %v404 = vpop.f32.mrf.mxu0
    %v405 = vpop.f32.mrf.mxu0
    %406 = vdwg.mxu0
    %v439 = vunpack.c.l.b16 %v305
    %v440 = vunpack.c.h.b16 %v305
    %v441 = vunpack.c.l.b16 %v306
    %v442 = vunpack.c.h.b16 %v306
    %v443 = vunpack.c.l.b16 %v307
    %v444 = vunpack.c.h.b16 %v307
    %v445 = vunpack.c.l.b16 %v308
    %v446 = vunpack.c.h.b16 %v308
    %v447 = vunpack.c.l.b16 %v309
    %v448 = vunpack.c.h.b16 %v309
    %v449 = vunpack.c.l.b16 %v310
    %v450 = vunpack.c.h.b16 %v310
    %v451 = vunpack.c.l.b16 %v311
    %v452 = vunpack.c.h.b16 %v311
    %v453 = vunpack.c.l.b16 %v312
    %v454 = vunpack.c.h.b16 %v312
    %v455 = vunpack.c.l.b16 %v313
    %v456 = vunpack.c.h.b16 %v313
    %v457 = vunpack.c.l.b16 %v314
    %v458 = vunpack.c.h.b16 %v314
    %v459 = vunpack.c.l.b16 %v315
    %v460 = vunpack.c.h.b16 %v315
    %v461 = vunpack.c.l.b16 %v316
    %v462 = vunpack.c.h.b16 %v316
    %v463 = vunpack.c.l.b16 %v317
    %v464 = vunpack.c.h.b16 %v317
    %v465 = vunpack.c.l.b16 %v318
    %v466 = vunpack.c.h.b16 %v318
    %v467 = vunpack.c.l.b16 %v319
    %v468 = vunpack.c.h.b16 %v319
    %v469 = vunpack.c.l.b16 %v320
    %v470 = vunpack.c.h.b16 %v320
    %v471 = vunpack.c.l.b16 %v321
    %v472 = vunpack.c.h.b16 %v321
    %v473 = vunpack.c.l.b16 %v322
    %v474 = vunpack.c.h.b16 %v322
    %v475 = vunpack.c.l.b16 %v323
    %v476 = vunpack.c.h.b16 %v323
    %v477 = vunpack.c.l.b16 %v324
    %v478 = vunpack.c.h.b16 %v324
    %v479 = vunpack.c.l.b16 %v325
    %v480 = vunpack.c.h.b16 %v325
    %v481 = vunpack.c.l.b16 %v326
    %v482 = vunpack.c.h.b16 %v326
    %v483 = vunpack.c.l.b16 %v327
    %v484 = vunpack.c.h.b16 %v327
    %v485 = vunpack.c.l.b16 %v328
    %v486 = vunpack.c.h.b16 %v328
    %v487 = vunpack.c.l.b16 %v329
    %v488 = vunpack.c.h.b16 %v329
    %v489 = vunpack.c.l.b16 %v330
    %v490 = vunpack.c.h.b16 %v330
    %v491 = vunpack.c.l.b16 %v331
    %v492 = vunpack.c.h.b16 %v331
    %v493 = vunpack.c.l.b16 %v332
    %v494 = vunpack.c.h.b16 %v332
    %v495 = vunpack.c.l.b16 %v333
    %v496 = vunpack.c.h.b16 %v333
    %v497 = vunpack.c.l.b16 %v334
    %v498 = vunpack.c.h.b16 %v334
    %v499 = vunpack.c.l.b16 %v335
    %v500 = vunpack.c.h.b16 %v335
    %v501 = vunpack.c.l.b16 %v336
    %v502 = vunpack.c.h.b16 %v336
    %v503 = vpack.c.b16 %v441, %v439
    %v504 = vpack.c.b16 %v442, %v440
    %v505 = vpack.c.b16 %v445, %v443
    %v506 = vpack.c.b16 %v446, %v444
    %v507 = vpack.c.b16 %v449, %v447
    %v508 = vpack.c.b16 %v450, %v448
    %v509 = vpack.c.b16 %v453, %v451
    %v510 = vpack.c.b16 %v454, %v452
    %v511 = vpack.c.b16 %v457, %v455
    %v512 = vpack.c.b16 %v458, %v456
    %v513 = vpack.c.b16 %v461, %v459
    %v514 = vpack.c.b16 %v462, %v460
    %v515 = vpack.c.b16 %v465, %v463
    %v516 = vpack.c.b16 %v466, %v464
    %v517 = vpack.c.b16 %v469, %v467
    %v518 = vpack.c.b16 %v470, %v468
    %v519 = vpack.c.b16 %v473, %v471
    %v520 = vpack.c.b16 %v474, %v472
    %v521 = vpack.c.b16 %v477, %v475
    %v522 = vpack.c.b16 %v478, %v476
    %v523 = vpack.c.b16 %v481, %v479
    %v524 = vpack.c.b16 %v482, %v480
    %v525 = vpack.c.b16 %v485, %v483
    %v526 = vpack.c.b16 %v486, %v484
    %v527 = vpack.c.b16 %v489, %v487
    %v528 = vpack.c.b16 %v490, %v488
    %v529 = vpack.c.b16 %v493, %v491
    %v530 = vpack.c.b16 %v494, %v492
    %v531 = vpack.c.b16 %v497, %v495
    %v532 = vpack.c.b16 %v498, %v496
    %v533 = vpack.c.b16 %v501, %v499
    %v534 = vpack.c.b16 %v502, %v500
    %567 = vmatprep.subr.bf16.mxu0 %v518
    %568 = vmatpush1.bf16.msra.mxu0 %v517
    %569 = vmatprep.subr.bf16.mxu0 %v516
    %570 = vmatpush1.bf16.msra.mxu0 %v515
    %571 = vmatprep.subr.bf16.mxu0 %v514
    %572 = vmatpush1.bf16.msra.mxu0 %v513
    %573 = vmatprep.subr.bf16.mxu0 %v512
    %574 = vmatpush1.bf16.msra.mxu0 %v511
    %575 = vmatprep.subr.bf16.mxu0 %v510
    %576 = vmatpush1.bf16.msra.mxu0 %v509
    %577 = vmatprep.subr.bf16.mxu0 %v508
    %578 = vmatpush1.bf16.msra.mxu0 %v507
    %579 = vmatprep.subr.bf16.mxu0 %v506
    %580 = vmatpush1.bf16.msra.mxu0 %v505
    %581 = vmatprep.subr.bf16.mxu0 %v504
    %582 = vmatpush1.bf16.msra.mxu0 %v503
    %583 = vmatprep.subr.bf16.mxu0 %v534
    %584 = vmatpush2.bf16.msra.mxu0 %v533
    %585 = vmatprep.subr.bf16.mxu0 %v532
    %586 = vmatpush2.bf16.msra.mxu0 %v531
    %587 = vmatprep.subr.bf16.mxu0 %v530
    %588 = vmatpush2.bf16.msra.mxu0 %v529
    %589 = vmatprep.subr.bf16.mxu0 %v528
    %590 = vmatpush2.bf16.msra.mxu0 %v527
    %591 = vmatprep.subr.bf16.mxu0 %v526
    %592 = vmatpush2.bf16.msra.mxu0 %v525
    %593 = vmatprep.subr.bf16.mxu0 %v524
    %594 = vmatpush2.bf16.msra.mxu0 %v523
    %595 = vmatprep.subr.bf16.mxu0 %v522
    %596 = vmatpush2.bf16.msra.mxu0 %v521
    %597 = vmatprep.subr.bf16.mxu0 %v520
    %598 = vmatpush2.bf16.msra.mxu0 %v519
    %599 = vmatprep.mubr.bf16.mxu0 %v304
    %600 = vmatmul.mubr.bf16.gmra.mxu0 %v303
    %v601 = vpop.f32.mrf.mxu0
    %v602 = vadd.f32 %v401, %v601
    %v603 = vpop.f32.mrf.mxu0
    %v604 = vadd.f32 %v403, %v603
    %v605 = vpop.f32.mrf.mxu0
    %v606 = vpop.f32.mrf.mxu0
    %607 = vdwg.mxu0
    %v608 = vld [vmem:[%s8] sm:$0x3]
    %v610 = vlaneseq
    %v611 = vshrl.u32 %v610, 7
    %v612 = vsub.s32 0, %v611
    %v613 = vrot.slane %v608, %v612
    %v614 = vlaneseq
    %v615 = vshrl.u32 %v614, 7
    %v616 = vsub.s32 1, %v615
    %v617 = vrot.slane %v608, %v616
    %v620 = vadd.f32 %v602, %v613
    %v621 = vadd.f32 %v604, %v617
    %v622 = vmax.f32 %v620, 0.0
    %v623 = vmax.f32 %v621, 0.0
    %v624 = vpack.c.bf16 %v622, %v622
    %v625 = vpack.c.bf16 %v623, %v623
    %v626 = vld [vmem:[%s9] sm:$0xff]
    %v627 = vld [vmem:[%s9 + $0x8] sm:$0xff]
    %v628 = vld [vmem:[%s9 + $0x10] sm:$0xff]
    %v629 = vld [vmem:[%s9 + $0x18] sm:$0xff]
    %v630 = vld [vmem:[%s9 + $0x20] sm:$0xff]
    %v631 = vld [vmem:[%s9 + $0x28] sm:$0xff]
    %v632 = vld [vmem:[%s9 + $0x30] sm:$0xff]
    %v633 = vld [vmem:[%s9 + $0x38] sm:$0xff]
    %v634 = vld [vmem:[%s9 + $0x40] sm:$0xff]
    %v635 = vld [vmem:[%s9 + $0x48] sm:$0xff]
    %v636 = vld [vmem:[%s9 + $0x50] sm:$0xff]
    %v637 = vld [vmem:[%s9 + $0x58] sm:$0xff]
    %v638 = vld [vmem:[%s9 + $0x60] sm:$0xff]
    %v639 = vld [vmem:[%s9 + $0x68] sm:$0xff]
    %v640 = vld [vmem:[%s9 + $0x70] sm:$0xff]
    %v641 = vld [vmem:[%s9 + $0x78] sm:$0xff]
    %v642 = vld [vmem:[%s9 + $0x80] sm:$0xff]
    %v643 = vld [vmem:[%s9 + $0x88] sm:$0xff]
    %v644 = vld [vmem:[%s9 + $0x90] sm:$0xff]
    %v645 = vld [vmem:[%s9 + $0x98] sm:$0xff]
    %v646 = vld [vmem:[%s9 + $0xa0] sm:$0xff]
    %v647 = vld [vmem:[%s9 + $0xa8] sm:$0xff]
    %v648 = vld [vmem:[%s9 + $0xb0] sm:$0xff]
    %v649 = vld [vmem:[%s9 + $0xb8] sm:$0xff]
    %v650 = vld [vmem:[%s9 + $0xc0] sm:$0xff]
    %v651 = vld [vmem:[%s9 + $0xc8] sm:$0xff]
    %v652 = vld [vmem:[%s9 + $0xd0] sm:$0xff]
    %v653 = vld [vmem:[%s9 + $0xd8] sm:$0xff]
    %v654 = vld [vmem:[%s9 + $0xe0] sm:$0xff]
    %v655 = vld [vmem:[%s9 + $0xe8] sm:$0xff]
    %v656 = vld [vmem:[%s9 + $0xf0] sm:$0xff]
    %v657 = vld [vmem:[%s9 + $0xf8] sm:$0xff]
    %v658 = vld [vmem:[%s10] sm:$0x3]
    %v660 = vlaneseq
    %v661 = vshrl.u32 %v660, 7
    %v662 = vsub.s32 0, %v661
    %v663 = vrot.slane %v658, %v662
    %v664 = vlaneseq
    %v665 = vshrl.u32 %v664, 7
    %v666 = vsub.s32 1, %v665
    %v667 = vrot.slane %v658, %v666
    %v702 = vunpack.c.l.b16 %v626
    %v703 = vunpack.c.h.b16 %v626
    %v704 = vunpack.c.l.b16 %v627
    %v705 = vunpack.c.h.b16 %v627
    %v706 = vunpack.c.l.b16 %v628
    %v707 = vunpack.c.h.b16 %v628
    %v708 = vunpack.c.l.b16 %v629
    %v709 = vunpack.c.h.b16 %v629
    %v710 = vunpack.c.l.b16 %v630
    %v711 = vunpack.c.h.b16 %v630
    %v712 = vunpack.c.l.b16 %v631
    %v713 = vunpack.c.h.b16 %v631
    %v714 = vunpack.c.l.b16 %v632
    %v715 = vunpack.c.h.b16 %v632
    %v716 = vunpack.c.l.b16 %v633
    %v717 = vunpack.c.h.b16 %v633
    %v718 = vunpack.c.l.b16 %v634
    %v719 = vunpack.c.h.b16 %v634
    %v720 = vunpack.c.l.b16 %v635
    %v721 = vunpack.c.h.b16 %v635
    %v722 = vunpack.c.l.b16 %v636
    %v723 = vunpack.c.h.b16 %v636
    %v724 = vunpack.c.l.b16 %v637
    %v725 = vunpack.c.h.b16 %v637
    %v726 = vunpack.c.l.b16 %v638
    %v727 = vunpack.c.h.b16 %v638
    %v728 = vunpack.c.l.b16 %v639
    %v729 = vunpack.c.h.b16 %v639
    %v730 = vunpack.c.l.b16 %v640
    %v731 = vunpack.c.h.b16 %v640
    %v732 = vunpack.c.l.b16 %v641
    %v733 = vunpack.c.h.b16 %v641
    %v734 = vunpack.c.l.b16 %v642
    %v735 = vunpack.c.h.b16 %v642
    %v736 = vunpack.c.l.b16 %v643
    %v737 = vunpack.c.h.b16 %v643
    %v738 = vunpack.c.l.b16 %v644
    %v739 = vunpack.c.h.b16 %v644
    %v740 = vunpack.c.l.b16 %v645
    %v741 = vunpack.c.h.b16 %v645
    %v742 = vunpack.c.l.b16 %v646
    %v743 = vunpack.c.h.b16 %v646
    %v744 = vunpack.c.l.b16 %v647
    %v745 = vunpack.c.h.b16 %v647
    %v746 = vunpack.c.l.b16 %v648
    %v747 = vunpack.c.h.b16 %v648
    %v748 = vunpack.c.l.b16 %v649
    %v749 = vunpack.c.h.b16 %v649
    %v750 = vunpack.c.l.b16 %v650
    %v751 = vunpack.c.h.b16 %v650
    %v752 = vunpack.c.l.b16 %v651
    %v753 = vunpack.c.h.b16 %v651
    %v754 = vunpack.c.l.b16 %v652
    %v755 = vunpack.c.h.b16 %v652
    %v756 = vunpack.c.l.b16 %v653
    %v757 = vunpack.c.h.b16 %v653
    %v758 = vunpack.c.l.b16 %v654
    %v759 = vunpack.c.h.b16 %v654
    %v760 = vunpack.c.l.b16 %v655
    %v761 = vunpack.c.h.b16 %v655
    %v762 = vunpack.c.l.b16 %v656
    %v763 = vunpack.c.h.b16 %v656
    %v764 = vunpack.c.l.b16 %v657
    %v765 = vunpack.c.h.b16 %v657
    %v766 = vpack.c.b16 %v704, %v702
    %v767 = vpack.c.b16 %v705, %v703
    %v768 = vpack.c.b16 %v708, %v706
    %v769 = vpack.c.b16 %v709, %v707
    %v770 = vpack.c.b16 %v712, %v710
    %v771 = vpack.c.b16 %v713, %v711
    %v772 = vpack.c.b16 %v716, %v714
    %v773 = vpack.c.b16 %v717, %v715
    %v774 = vpack.c.b16 %v720, %v718
    %v775 = vpack.c.b16 %v721, %v719
    %v776 = vpack.c.b16 %v724, %v722
    %v777 = vpack.c.b16 %v725, %v723
    %v778 = vpack.c.b16 %v728, %v726
    %v779 = vpack.c.b16 %v729, %v727
    %v780 = vpack.c.b16 %v732, %v730
    %v781 = vpack.c.b16 %v733, %v731
    %v782 = vpack.c.b16 %v736, %v734
    %v783 = vpack.c.b16 %v737, %v735
    %v784 = vpack.c.b16 %v740, %v738
    %v785 = vpack.c.b16 %v741, %v739
    %v786 = vpack.c.b16 %v744, %v742
    %v787 = vpack.c.b16 %v745, %v743
    %v788 = vpack.c.b16 %v748, %v746
    %v789 = vpack.c.b16 %v749, %v747
    %v790 = vpack.c.b16 %v752, %v750
    %v791 = vpack.c.b16 %v753, %v751
    %v792 = vpack.c.b16 %v756, %v754
    %v793 = vpack.c.b16 %v757, %v755
    %v794 = vpack.c.b16 %v760, %v758
    %v795 = vpack.c.b16 %v761, %v759
    %v796 = vpack.c.b16 %v764, %v762
    %v797 = vpack.c.b16 %v765, %v763
    %830 = vmatprep.subr.bf16.mxu0 %v781
    %831 = vmatpush1.bf16.msra.mxu0 %v780
    %832 = vmatprep.subr.bf16.mxu0 %v779
    %833 = vmatpush1.bf16.msra.mxu0 %v778
    %834 = vmatprep.subr.bf16.mxu0 %v777
    %835 = vmatpush1.bf16.msra.mxu0 %v776
    %836 = vmatprep.subr.bf16.mxu0 %v775
    %837 = vmatpush1.bf16.msra.mxu0 %v774
    %838 = vmatprep.subr.bf16.mxu0 %v773
    %839 = vmatpush1.bf16.msra.mxu0 %v772
    %840 = vmatprep.subr.bf16.mxu0 %v771
    %841 = vmatpush1.bf16.msra.mxu0 %v770
    %842 = vmatprep.subr.bf16.mxu0 %v769
    %843 = vmatpush1.bf16.msra.mxu0 %v768
    %844 = vmatprep.subr.bf16.mxu0 %v767
    %845 = vmatpush1.bf16.msra.mxu0 %v766
    %846 = vmatprep.subr.bf16.mxu0 %v797
    %847 = vmatpush2.bf16.msra.mxu0 %v796
    %848 = vmatprep.subr.bf16.mxu0 %v795
    %849 = vmatpush2.bf16.msra.mxu0 %v794
    %850 = vmatprep.subr.bf16.mxu0 %v793
    %851 = vmatpush2.bf16.msra.mxu0 %v792
    %852 = vmatprep.subr.bf16.mxu0 %v791
    %853 = vmatpush2.bf16.msra.mxu0 %v790
    %854 = vmatprep.subr.bf16.mxu0 %v789
    %855 = vmatpush2.bf16.msra.mxu0 %v788
    %856 = vmatprep.subr.bf16.mxu0 %v787
    %857 = vmatpush2.bf16.msra.mxu0 %v786
    %858 = vmatprep.subr.bf16.mxu0 %v785
    %859 = vmatpush2.bf16.msra.mxu0 %v784
    %860 = vmatprep.subr.bf16.mxu0 %v783
    %861 = vmatpush2.bf16.msra.mxu0 %v782
    %862 = vmatprep.mubr.bf16.mxu0 %v625
    %863 = vmatmul.mubr.bf16.gmra.mxu0 %v624
    %v864 = vpop.f32.mrf.mxu0
    %v865 = vadd.f32 %v663, %v864
    %v866 = vpop.f32.mrf.mxu0
    %v867 = vadd.f32 %v667, %v866
    %v868 = vpop.f32.mrf.mxu0
    %v869 = vpop.f32.mrf.mxu0
    %870 = vdwg.mxu0
    %v871 = vsub.f32 %v865, %v47
    %v872 = vsub.f32 %v867, %v48
    %s873 = sld [smem:[#allocation3]]
    %v874 = vmul.f32 %v871, %v871
    %v875 = vmul.f32 %v872, %v872
    %v876 = vadd.f32 %v874, %v875
    %877 = vadd.xlane.f32.xlu0 %v876
    %v878 = vpop.xlane.xlu0 %877
    %v879 = vrot.slane %v878, 4
    %v880 = vadd.f32 %v878, %v879
    %v881 = vrot.slane %v880, 2
    %v882 = vadd.f32 %v880, %v881
    %v883 = vrot.slane %v882, 1
    %v884 = vadd.f32 %v882, %v883
    %s885 = vtos %v884
    %s886 = sadd.f32 %s873, %s885
    %s887 = scalar_lea.smem [#allocation3], 0
    %888 = sst [smem:[%s887]] %s886
    // Predicated region
    $region50: #{_forward.1} parent=1 // pred_check
      %p889 = pneg %p41
    $region51: #{_forward.1} parent=1 // pred_check_branch
      %891 = sbr.rel (%p889) target = $region53
    $region52: #{_forward.1} parent=1 // pred_region
      %s892 = sld [smem:[#allocation3]]
      %s893 = sld [smem:[#allocation2]]
      %s894 = smul.f32 %s893, 0.00048828125
      %s895 = smul.f32 %s892, %s894
      %896 = sst [smem:[%s887]] %s895
    $region53: #{_forward.1} parent=1 // pred_fallthru
      _
    // Predicated region
    $region54: #{_forward.1} parent=1 // pred_check
      _
    $region55: #{_forward.1} parent=1 // pred_check_branch
      %898 = sbr.rel (0) target = $region57
    $region56: #{_forward.1} parent=1 // pred_region
      %s900 = ssub.s32 16, 16
      %901 = vsyncadd [#allocation4], %s900
      %904 = dma.smem_to_hbm [#allocation3], 16, %s11, [#allocation4]
    $region57: #{_forward.1} parent=1 // pred_fallthru
      _
    // Predicated region
    $region58: #{_forward.1} parent=1 // pred_check
      _
    $region59: #{_forward.1} parent=1 // pred_check_branch
      %906 = sbr.rel (0) target = $region61
    $region60: #{_forward.1} parent=1 // pred_region
      %907 = dma.done [#allocation4], 16
    $region61: #{_forward.1} parent=1 // pred_fallthru
      _
    %908 = sfence
    %909 = vsyncpa [#allocation4], 1

</llo_original>
